<compile_context>
chip_gen: v6e
topology: v6e:2x2x1
jax: 0.10.0
libtpu: 0.0.40
codegen_flags: <defaults>
</compile_context>

<pallas_src>
import functools
import math

import jax
import jax.numpy as jnp
from jax.experimental import pallas as pl
from jax.experimental.pallas import tpu as pltpu

_LANE = 128


def _round_up(x, n):
    return ((x + n - 1) // n) * n


def _amsoftmax_kernel(cos_ref, phi_ref, sfull_ref, out_ref, l_acc, *,
                      s, t, gamma, shift, n_classes, mask_cols):
    c = pl.program_id(1)
    nc = pl.num_programs(1)

    @pl.when(c == 0)
    def _init():
        l_acc[...] = jnp.zeros_like(l_acc)

    TB, TC = cos_ref.shape
    phi_t = phi_ref[...]                               # [TB, 1] f32, margin'd target

    if mask_cols:
        # only needed when C % TC != 0; (1,128) lane iota, broadcast in the select
        lane = jax.lax.broadcasted_iota(jnp.int32, (1, _LANE), 1)
        col0 = c * TC

    # Fused per-128-lane-chunk pass: upcast -> (optional support-vector select)
    # -> scale/shift -> exp -> accumulate.  No running max, no [TB,TC] temporaries.
    l_new = l_acc[...]
    for k in range(TC // _LANE):
        x = cos_ref[:, k * _LANE:(k + 1) * _LANE].astype(jnp.float32)   # [TB,128]
        if t > 1.0:
            x = jnp.where(x > phi_t, (t - 1.0) + t * x, x)
        e = s * x - shift                              # bounded: e <= 0 for real cosines
        if mask_cols:
            e = jnp.where(col0 + (k * _LANE) + lane < n_classes, e, -1e30)
        l_new = l_new + jnp.exp(e)
    l_acc[...] = l_new

    @pl.when(c == nc - 1)
    def _finalize():
        sphi = s * phi_t                                               # [TB, 1]
        l_row = jnp.sum(l_new, axis=1, keepdims=True)                  # one XLU reduce / row block
        # Swap the bulk-formula target term for the true margin term (same f32 shift).
        e_phi = jnp.exp(sphi - shift)
        l_row = l_row - jnp.exp(sfull_ref[...] - shift) + e_phi
        l_row = jnp.maximum(l_row, e_phi)              # guard against cancellation noise
        ce = shift + jnp.log(l_row) - sphi             # per-sample CE
        if t == 1.0 and gamma > 0.0:                   # focal path
            w = 1.0 - jnp.exp(-ce)
            g = int(gamma) if gamma == float(int(gamma)) else gamma
            ce = (w ** g) * ce
        out_ref[...] = ce


def am_softmax_loss(cos_theta, targets, *, margin_type='cos', gamma=0.0,
                    m=0.35, s=30.0, t=1.0, block_b=256, block_c=2048):
    assert margin_type in ('cos', 'arc')
    assert gamma >= 0 and m > 0 and s > 0 and t >= 1
    B, C = cos_theta.shape
    targets = targets.astype(jnp.int32)
    s, m, t, gamma = float(s), float(m), float(t), float(gamma)

    # O(B) target gather + margin in plain JAX; the kernel only sees [B,1] scalars.
    cos_t = jnp.take_along_axis(cos_theta, targets[:, None], axis=1).astype(jnp.float32)
    if margin_type == 'cos':
        phi_t = cos_t - m
    else:
        sine_t = jnp.sqrt(jnp.maximum(1.0 - cos_t * cos_t, 0.0))      # clamp: no NaN
        phi_t = jnp.where(cos_t > math.cos(math.pi - m),
                          cos_t * math.cos(m) - sine_t * math.sin(m),
                          cos_t - math.sin(m) * m)
    if t > 1.0:
        # value the bulk formula assigns to the target column (swapped out in-kernel)
        f_t = jnp.where(cos_t > phi_t, (t - 1.0) + t * cos_t, cos_t)
        shift = s * (2.0 * t - 1.0)                    # |t-1+t*cos| <= 2t-1
    else:
        f_t = cos_t
        shift = s                                      # cos in [-1,1] -> logits <= s
    sfull = s * f_t

    # Tile sizes; the big [B,C] matrix is never padded or copied.
    block_b = _round_up(block_b, 8)
    TB = min(block_b, _round_up(B, 8))
    if B > 8:
        # keep >= 2 row blocks when possible so both v7x TensorCores get work
        TB = min(TB, max(8, _round_up(pl.cdiv(B, 2), 8)))
    if TB > B:                                         # tiny batch: block == full dim
        TB = B
    TC = min(_round_up(block_c, _LANE), _round_up(C, _LANE))
    mask_cols = (C % TC) != 0
    Bp = _round_up(B, TB)
    grid = (Bp // TB, pl.cdiv(C, TC))

    # Only the tiny [B,1] side inputs are padded (O(B)); garbage rows from partial
    # row blocks of cos_theta land in output rows >= B and are sliced off below.
    phi_p = jnp.pad(phi_t, ((0, Bp - B), (0, 0)))
    sfull_p = jnp.pad(sfull, ((0, Bp - B), (0, 0)))

    kernel = functools.partial(
        _amsoftmax_kernel, s=s, t=t, gamma=gamma, shift=float(shift),
        n_classes=C, mask_cols=mask_cols)

    itemsize = jnp.dtype(cos_theta.dtype).itemsize
    ce = pl.pallas_call(
        kernel,
        out_shape=jax.ShapeDtypeStruct((Bp, 1), jnp.float32),
        grid_spec=pltpu.PrefetchScalarGridSpec(
            num_scalar_prefetch=0,
            grid=grid,
            in_specs=[
                pl.BlockSpec((TB, TC), lambda b, c: (b, c)),
                pl.BlockSpec((TB, 1), lambda b, c: (b, 0)),
                pl.BlockSpec((TB, 1), lambda b, c: (b, 0)),
            ],
            out_specs=pl.BlockSpec((TB, 1), lambda b, c: (b, 0)),
            scratch_shapes=[pltpu.VMEM((TB, _LANE), jnp.float32)],
        ),
        compiler_params=pltpu.CompilerParams(
            dimension_semantics=("parallel", "arbitrary"),
            vmem_limit_bytes=32 * 1024 * 1024),
        cost_estimate=pl.CostEstimate(
            flops=5 * B * C,
            transcendentals=B * C,
            bytes_accessed=B * C * itemsize + 24 * B),
    )(cos_theta, phi_p, sfull_p)

    # Batch mean (drop rows >= B) in plain JAX so B stays tile-/core-parallel.
    return jnp.mean(ce[:B, 0])


def _reference_loss(cos_theta, targets, *, margin_type, gamma, m, s, t):
    """Pure-JAX reference matching the PyTorch module."""
    x = cos_theta.astype(jnp.float32)
    B, C = x.shape
    index = jax.nn.one_hot(targets, C, dtype=bool)
    if margin_type == 'cos':
        phi = x - m
    else:
        sine = jnp.sqrt(jnp.maximum(1.0 - x * x, 0.0))
        phi = x * math.cos(m) - sine * math.sin(m)
        phi = jnp.where(x > math.cos(math.pi - m), phi, x - math.sin(m) * m)
    out = jnp.where(index, phi, x)
    if t > 1.0:
        h = (t - 1.0) + t * x
        phi_t = jnp.sum(jnp.where(index, phi, 0.0), axis=1, keepdims=True)
        sv = jnp.logical_and(~index, (phi_t - x) < 0.0)
        out = jnp.where(sv, h, out)
    logits = s * out
    lse = jax.scipy.special.logsumexp(logits, axis=1)
    tgt_logit = jnp.sum(jnp.where(index, logits, 0.0), axis=1)
    ce = lse - tgt_logit
    if (gamma == 0.0 and t == 1.0) or t > 1.0:
        return jnp.mean(ce)
    p = jnp.exp(-ce)
    return jnp.mean(((1.0 - p) ** gamma) * ce)


if __name__ == "__main__":
    B, C = 6, 300   # small demo shapes (exercise ragged row and column blocks)
    key = jax.random.PRNGKey(0)
    k1, k2 = jax.random.split(key)
    cos_theta = jax.random.uniform(k1, (B, C), dtype=jnp.float32,
                                   minval=-1.0, maxval=1.0)
    targets = jax.random.randint(k2, (B,), 0, C, dtype=jnp.int32)

    configs = [
        dict(margin_type='cos', gamma=0.0, m=0.35, s=30.0, t=1.0),   # plain CE
        dict(margin_type='arc', gamma=0.0, m=0.35, s=30.0, t=1.0),   # arc margin
        dict(margin_type='cos', gamma=2.0, m=0.35, s=30.0, t=1.0),   # focal loss
        dict(margin_type='cos', gamma=0.0, m=0.35, s=30.0, t=1.2),   # support vectors
    ]
    for cfg in configs:
        got = am_softmax_loss(cos_theta, targets, **cfg)
        want = _reference_loss(cos_theta, targets, **cfg)
        jax.block_until_ready(got)
        assert jnp.allclose(got, want, rtol=2e-3, atol=2e-3), (cfg, got, want)

    # Multi C-tile + ragged-column path (300 % 128 != 0): exercises the running
    # sum across grid steps and the in-kernel column mask.
    got = am_softmax_loss(cos_theta, targets, margin_type='arc', gamma=2.0,
                          block_c=128)
    want = _reference_loss(cos_theta, targets, margin_type='arc', gamma=2.0,
                           m=0.35, s=30.0, t=1.0)
    jax.block_until_ready(got)
    assert jnp.allclose(got, want, rtol=2e-3, atol=2e-3)

    # Multiple row blocks with a ragged last row block (partial cos reads).
    B2 = 20
    k3, k4 = jax.random.split(k2)
    cos2 = jax.random.uniform(k3, (B2, C), dtype=jnp.float32, minval=-1.0, maxval=1.0)
    tgt2 = jax.random.randint(k4, (B2,), 0, C, dtype=jnp.int32)
    got = am_softmax_loss(cos2, tgt2, margin_type='cos', gamma=2.0, block_c=128)
    want = _reference_loss(cos2, tgt2, margin_type='cos', gamma=2.0,
                           m=0.35, s=30.0, t=1.0)
    jax.block_until_ready(got)
    assert jnp.allclose(got, want, rtol=2e-3, atol=2e-3)

    # bf16 storage path (halves HBM traffic; per-chunk f32 upcast inside the kernel).
    got = am_softmax_loss(cos_theta.astype(jnp.bfloat16), targets, margin_type='cos')
    want = _reference_loss(cos_theta.astype(jnp.bfloat16), targets,
                           margin_type='cos', gamma=0.0, m=0.35, s=30.0, t=1.0)
    jax.block_until_ready(got)
    assert jnp.allclose(got, want, rtol=2e-3, atol=2e-3)

    print("KERNEL_OK")
</pallas_src>

<mosaic_0001>
module attributes {stable_mosaic.version = 11 : i64} {
  func.func @_amsoftmax_kernel(%arg0: i32, %arg1: i32, %arg2: memref<6x384xf32, #tpu.memory_space<vmem>>, %arg3: memref<6x1xf32, #tpu.memory_space<vmem>>, %arg4: memref<6x1xf32, #tpu.memory_space<vmem>>, %arg5: memref<6x1xf32, #tpu.memory_space<vmem>>, %arg6: memref<6x128xf32, #tpu.memory_space<vmem>>) attributes {dimension_semantics = [#tpu.dimension_semantics<parallel>, #tpu.dimension_semantics<arbitrary>], iteration_bounds = array<i64: 1, 1>, scalar_prefetch = 0 : i64, scratch_operands = 1 : i64, tpu.core_type = #tpu.core_type<tc>, window_params = [{transform_indices = @transform_0, window_bounds = array<i64: 6, 384>}, {transform_indices = @transform_1, window_bounds = array<i64: 6, 1>}, {transform_indices = @transform_2, window_bounds = array<i64: 6, 1>}, {transform_indices = @transform_3, window_bounds = array<i64: 6, 1>}]} {
    %c0_i32 = arith.constant 0 : i32
    %0 = arith.cmpi eq, %arg1, %c0_i32 : i32
    %1 = arith.extui %0 : i1 to i32
    %c0_i32_0 = arith.constant 0 : i32
    %2 = arith.cmpi ne, %1, %c0_i32_0 : i32
    scf.if %2 {
      %cst_23 = arith.constant 0.000000e+00 : f32
      %59 = vector.broadcast %cst_23 : f32 to vector<6x128xf32>
      %c0_24 = arith.constant 0 : index
      %c0_25 = arith.constant 0 : index
      %60 = vector.load %arg6[%c0_24, %c0_25] : memref<6x128xf32, #tpu.memory_space<vmem>>, vector<6x128xf32>
      tpu.vector_store %arg6[%c0_24, %c0_25], %59 {strides = array<i32>} : memref<6x128xf32, #tpu.memory_space<vmem>>, vector<6x128xf32>,
    } else {
    }
    %c0 = arith.constant 0 : index
    %c0_1 = arith.constant 0 : index
    %3 = vector.load %arg3[%c0, %c0_1] : memref<6x1xf32, #tpu.memory_space<vmem>>, vector<6x1xf32>
    %4 = tpu.iota {dimensions = array<i32: 1>} : vector<1x128xi32>
    %c384_i32 = arith.constant 384 : i32
    %5 = arith.muli %arg1, %c384_i32 : i32
    %c0_2 = arith.constant 0 : index
    %c0_3 = arith.constant 0 : index
    %6 = vector.load %arg6[%c0_2, %c0_3] : memref<6x128xf32, #tpu.memory_space<vmem>>, vector<6x128xf32>
    %c0_4 = arith.constant 0 : index
    %c0_5 = arith.constant 0 : index
    %7 = vector.load %arg2[%c0_4, %c0_5] : memref<6x384xf32, #tpu.memory_space<vmem>>, vector<6x128xf32>
    %cst = arith.constant 3.000000e+01 : f32
    %8 = vector.broadcast %cst : f32 to vector<6x128xf32>
    %9 = arith.mulf %8, %7 : vector<6x128xf32>
    %cst_6 = arith.constant 3.000000e+01 : f32
    %10 = vector.broadcast %cst_6 : f32 to vector<6x128xf32>
    %11 = arith.subf %9, %10 : vector<6x128xf32>
    %c0_i32_7 = arith.constant 0 : i32
    %12 = arith.addi %5, %c0_i32_7 : i32
    %13 = vector.broadcast %12 : i32 to vector<1x128xi32>
    %14 = arith.addi %13, %4 : vector<1x128xi32>
    %c300_i32 = arith.constant 300 : i32
    %15 = vector.broadcast %c300_i32 : i32 to vector<1x128xi32>
    %16 = arith.cmpi slt, %14, %15 : vector<1x128xi32>
    %cst_8 = arith.constant -1.000000e+30 : f32
    %17 = vector.shape_cast %16 : vector<1x128xi1> to vector<1x128xi1>
    %18 = vector.broadcast %17 : vector<1x128xi1> to vector<6x128xi1>
    %19 = vector.broadcast %cst_8 : f32 to vector<6x128xf32>
    %20 = arith.select %18, %11, %19 : vector<6x128xi1>, vector<6x128xf32>
    %21 = math.exp %20 : vector<6x128xf32>
    %22 = arith.addf %6, %21 : vector<6x128xf32>
    %c0_9 = arith.constant 0 : index
    %c128 = arith.constant 128 : index
    %23 = vector.load %arg2[%c0_9, %c128] : memref<6x384xf32, #tpu.memory_space<vmem>>, vector<6x128xf32>
    %cst_10 = arith.constant 3.000000e+01 : f32
    %24 = vector.broadcast %cst_10 : f32 to vector<6x128xf32>
    %25 = arith.mulf %24, %23 : vector<6x128xf32>
    %cst_11 = arith.constant 3.000000e+01 : f32
    %26 = vector.broadcast %cst_11 : f32 to vector<6x128xf32>
    %27 = arith.subf %25, %26 : vector<6x128xf32>
    %c128_i32 = arith.constant 128 : i32
    %28 = arith.addi %5, %c128_i32 : i32
    %29 = vector.broadcast %28 : i32 to vector<1x128xi32>
    %30 = arith.addi %29, %4 : vector<1x128xi32>
    %c300_i32_12 = arith.constant 300 : i32
    %31 = vector.broadcast %c300_i32_12 : i32 to vector<1x128xi32>
    %32 = arith.cmpi slt, %30, %31 : vector<1x128xi32>
    %cst_13 = arith.constant -1.000000e+30 : f32
    %33 = vector.shape_cast %32 : vector<1x128xi1> to vector<1x128xi1>
    %34 = vector.broadcast %33 : vector<1x128xi1> to vector<6x128xi1>
    %35 = vector.broadcast %cst_13 : f32 to vector<6x128xf32>
    %36 = arith.select %34, %27, %35 : vector<6x128xi1>, vector<6x128xf32>
    %37 = math.exp %36 : vector<6x128xf32>
    %38 = arith.addf %22, %37 : vector<6x128xf32>
    %c0_14 = arith.constant 0 : index
    %c256 = arith.constant 256 : index
    %39 = vector.load %arg2[%c0_14, %c256] : memref<6x384xf32, #tpu.memory_space<vmem>>, vector<6x128xf32>
    %cst_15 = arith.constant 3.000000e+01 : f32
    %40 = vector.broadcast %cst_15 : f32 to vector<6x128xf32>
    %41 = arith.mulf %40, %39 : vector<6x128xf32>
    %cst_16 = arith.constant 3.000000e+01 : f32
    %42 = vector.broadcast %cst_16 : f32 to vector<6x128xf32>
    %43 = arith.subf %41, %42 : vector<6x128xf32>
    %c256_i32 = arith.constant 256 : i32
    %44 = arith.addi %5, %c256_i32 : i32
    %45 = vector.broadcast %44 : i32 to vector<1x128xi32>
    %46 = arith.addi %45, %4 : vector<1x128xi32>
    %c300_i32_17 = arith.constant 300 : i32
    %47 = vector.broadcast %c300_i32_17 : i32 to vector<1x128xi32>
    %48 = arith.cmpi slt, %46, %47 : vector<1x128xi32>
    %cst_18 = arith.constant -1.000000e+30 : f32
    %49 = vector.shape_cast %48 : vector<1x128xi1> to vector<1x128xi1>
    %50 = vector.broadcast %49 : vector<1x128xi1> to vector<6x128xi1>
    %51 = vector.broadcast %cst_18 : f32 to vector<6x128xf32>
    %52 = arith.select %50, %43, %51 : vector<6x128xi1>, vector<6x128xf32>
    %53 = math.exp %52 : vector<6x128xf32>
    %54 = arith.addf %38, %53 : vector<6x128xf32>
    %c0_19 = arith.constant 0 : index
    %c0_20 = arith.constant 0 : index
    %55 = vector.load %arg6[%c0_19, %c0_20] : memref<6x128xf32, #tpu.memory_space<vmem>>, vector<6x128xf32>
    tpu.vector_store %arg6[%c0_19, %c0_20], %54 {strides = array<i32>} : memref<6x128xf32, #tpu.memory_space<vmem>>, vector<6x128xf32>,
    %c0_i32_21 = arith.constant 0 : i32
    %56 = arith.cmpi eq, %arg1, %c0_i32_21 : i32
    %57 = arith.extui %56 : i1 to i32
    %c0_i32_22 = arith.constant 0 : i32
    %58 = arith.cmpi ne, %57, %c0_i32_22 : i32
    scf.if %58 {
      %cst_23 = arith.constant 3.000000e+01 : f32
      %59 = vector.broadcast %cst_23 : f32 to vector<6x1xf32>
      %60 = arith.mulf %59, %3 : vector<6x1xf32>
      %cst_24 = arith.constant dense<0.000000e+00> : vector<6xf32>
      %61 = vector.multi_reduction <add>, %54, %cst_24 [1] : vector<6x128xf32> to vector<6xf32>
      %62 = vector.shape_cast %61 : vector<6xf32> to vector<6x1xf32>
      %cst_25 = arith.constant 3.000000e+01 : f32
      %63 = vector.broadcast %cst_25 : f32 to vector<6x1xf32>
      %64 = arith.subf %60, %63 : vector<6x1xf32>
      %65 = math.exp %64 : vector<6x1xf32>
      %c0_26 = arith.constant 0 : index
      %c0_27 = arith.constant 0 : index
      %66 = vector.load %arg4[%c0_26, %c0_27] : memref<6x1xf32, #tpu.memory_space<vmem>>, vector<6x1xf32>
      %cst_28 = arith.constant 3.000000e+01 : f32
      %67 = vector.broadcast %cst_28 : f32 to vector<6x1xf32>
      %68 = arith.subf %66, %67 : vector<6x1xf32>
      %69 = math.exp %68 : vector<6x1xf32>
      %70 = arith.subf %62, %69 : vector<6x1xf32>
      %71 = arith.addf %70, %65 : vector<6x1xf32>
      %72 = arith.maximumf %71, %65 : vector<6x1xf32>
      %73 = math.log %72 : vector<6x1xf32>
      %cst_29 = arith.constant 3.000000e+01 : f32
      %74 = vector.broadcast %cst_29 : f32 to vector<6x1xf32>
      %75 = arith.addf %74, %73 : vector<6x1xf32>
      %76 = arith.subf %75, %60 : vector<6x1xf32>
      %c0_30 = arith.constant 0 : index
      %c0_31 = arith.constant 0 : index
      %77 = vector.load %arg5[%c0_30, %c0_31] : memref<6x1xf32, #tpu.memory_space<vmem>>, vector<6x1xf32>
      tpu.vector_store %arg5[%c0_30, %c0_31], %76 {strides = array<i32>} : memref<6x1xf32, #tpu.memory_space<vmem>>, vector<6x1xf32>,
    } else {
    }
    return
  }
  func.func @transform_0(%arg0: i32, %arg1: i32) -> (i32, i32) {
    %c0_i32 = arith.constant 0 : i32
    return %arg0, %arg1 : i32, i32
  }
  func.func @transform_1(%arg0: i32, %arg1: i32) -> (i32, i32) {
    %c0_i32 = arith.constant 0 : i32
    %c0_i32_0 = arith.constant 0 : i32
    return %arg0, %c0_i32 : i32, i32
  }
  func.func @transform_2(%arg0: i32, %arg1: i32) -> (i32, i32) {
    %c0_i32 = arith.constant 0 : i32
    %c0_i32_0 = arith.constant 0 : i32
    return %arg0, %c0_i32 : i32, i32
  }
  func.func @transform_3(%arg0: i32, %arg1: i32) -> (i32, i32) {
    %c0_i32 = arith.constant 0 : i32
    %c0_i32_0 = arith.constant 0 : i32
    return %arg0, %c0_i32 : i32, i32
  }
}

</mosaic_0001>

<llo_original>
// kernel: tpu_custom_call.1
$region0: #{tpu_custom_call.1}
  #allocation0 [shape = 'u32[]', space=smem, size = 0x4, offset = 0x4, fixed_abs, tag = 'smem constant byte address 0x4 - core index']
  #allocation1 [shape = 'u32[144,128]{1,0:T(1,128)}', space=vmem, size = 0x12000, scoped, tag = 'internal scratch']
  #allocation2 [shape = 'f32[6,128]{1,0:T(8,128)}', space=vmem, size = 0x1000, scoped, tag = 'scratch operand']
  %s0 = inlined_call_operand.hbm [shape: f32[6,300], index: 0, kind: input, shape index: {}]
  %s1 = inlined_call_operand.vmem [shape: f32[6,1], index: 1, kind: input, shape index: {}]
  %s2 = inlined_call_operand.vmem [shape: f32[6,1], index: 2, kind: input, shape index: {}]
  %s3 = inlined_call_operand.vmem [shape: f32[6,1], index: 3, kind: output, shape index: {}]
  %s4 = sld [smem:[#allocation0]]
  $region34: #{tpu_custom_call.1} parent=0
    _
  %s6 = ssub.s32 1, %s4
  %s7 = scalar_select 0, %s6, %s4
  $region1: #{tpu_custom_call.1} parent=0
    #allocation3 [shape = 'u8[12288]{0}', space=vmem, size = 0x3000, scoped, tag = 'input window, operand 0, single buffered']
    #allocation4 [shape = 's32[1]{0}', space=sflag, size = 0x4, scoped, tag = 'scoped memory for tpu_custom_call.1']
    %8 = vsyncpa [#allocation4], 0
    // Predicated region
    $region2: #{tpu_custom_call.1} parent=1 // pred_check
      _
    $region3: #{tpu_custom_call.1} parent=1 // pred_check_branch
      %10 = sbr.rel (0) target = $region5
    $region4: #{tpu_custom_call.1} parent=1 // pred_region
      %s12 = ssub.s32 384, 384
      %13 = vsyncadd [#allocation4], %s12
      %s15 = sshll.u32 [#allocation3], 4
      %s16 = int_to_ptr.vmem [resolvable:$true] %s15
      %18 = dma.hbm_to_vmem [thread:$0]  %s0, 384, %s16, [#allocation4]
    $region5: #{tpu_custom_call.1} parent=1 // pred_fallthru
      _
    // Predicated region
    $region6: #{tpu_custom_call.1} parent=1 // pred_check
      _
    $region7: #{tpu_custom_call.1} parent=1 // pred_check_branch
      %20 = sbr.rel (0) target = $region9
    $region8: #{tpu_custom_call.1} parent=1 // pred_region
      _
    $region9: #{tpu_custom_call.1} parent=1 // pred_fallthru
      _
    // Predicated region
    $region10: #{tpu_custom_call.1} parent=1 // pred_check
      _
    $region11: #{tpu_custom_call.1} parent=1 // pred_check_branch
      %22 = sbr.rel (0) target = $region13
    $region12: #{tpu_custom_call.1} parent=1 // pred_region
      _
    $region13: #{tpu_custom_call.1} parent=1 // pred_fallthru
      _
    // Predicated region
    $region14: #{tpu_custom_call.1} parent=1 // pred_check
      _
    $region15: #{tpu_custom_call.1} parent=1 // pred_check_branch
      %24 = sbr.rel (0) target = $region17
    $region16: #{tpu_custom_call.1} parent=1 // pred_region
      %25 = dma.done [#allocation4], 384
    $region17: #{tpu_custom_call.1} parent=1 // pred_fallthru
      _
    %p26 = scmp.eq.s32.totalorder 0, 0
    // Predicated region
    $region18: #{tpu_custom_call.1} parent=1 // pred_check
      %p27 = pneg %p26
    $region19: #{tpu_custom_call.1} parent=1 // pred_check_branch
      %29 = sbr.rel (%p27) target = $region21
    $region20: #{tpu_custom_call.1} parent=1 // pred_region
      %30 = vst [vmem:[#allocation2] sm:$0x3f] 0.0
    $region21: #{tpu_custom_call.1} parent=1 // pred_fallthru
      _
    %v31 = vld [vmem:[%s1] sm:$0x3f]
    %v32 = vlaneseq
    %v33 = vand.u32 %v32, 127
    %s34 = smul.u32 0, 384
    %v35 = vld [vmem:[#allocation2] sm:$0x3f]
    %v36 = vld [vmem:[#allocation3] sm:$0x3f]
    %v37 = vmul.f32 %v36, 30.0
    %v38 = vsub.f32 %v37, 30.0
    %v39 = vstv %s34
    %v40 = vadd.s32 %v39, %v33
    %vm41 = vcmp.lt.s32.totalorder %v40, 300
    %v42 = vsel %vm41, 1, 0
    %vm43 = vcmp.eq.s32.totalorder %v42, 1
    %v44 = vsel %vm43, %v38, -1e+30
    %v45 = vmul.f32 %v44, 1.442695
    %v46 = vpow.pop %v45
    %v47 = vadd.f32 %v35, %v46
    %v48 = vld [vmem:[#allocation3 + $0x8] sm:$0x3f]
    %v49 = vmul.f32 %v48, 30.0
    %v50 = vsub.f32 %v49, 30.0
    %s51 = sadd.s32 %s34, 128
    %v52 = vstv %s51
    %v53 = vadd.s32 %v52, %v33
    %vm54 = vcmp.lt.s32.totalorder %v53, 300
    %v55 = vsel %vm54, 1, 0
    %vm56 = vcmp.eq.s32.totalorder %v55, 1
    %v57 = vsel %vm56, %v50, -1e+30
    %v58 = vmul.f32 %v57, 1.442695
    %v59 = vpow.pop %v58
    %v60 = vadd.f32 %v47, %v59
    %v61 = vld [vmem:[#allocation3 + $0x10] sm:$0x3f]
    %v62 = vmul.f32 %v61, 30.0
    %v63 = vsub.f32 %v62, 30.0
    %s64 = sadd.s32 %s34, 256
    %v65 = vstv %s64
    %v66 = vadd.s32 %v65, %v33
    %vm67 = vcmp.lt.s32.totalorder %v66, 300
    %v68 = vsel %vm67, 1, 0
    %vm69 = vcmp.eq.s32.totalorder %v68, 1
    %v70 = vsel %vm69, %v63, -1e+30
    %v71 = vmul.f32 %v70, 1.442695
    %v72 = vpow.pop %v71
    %v73 = vadd.f32 %v60, %v72
    %74 = vst [vmem:[#allocation2] sm:$0x3f] %v73
    // Predicated region
    $region22: #{tpu_custom_call.1} parent=1 // pred_check
      %p75 = pneg %p26
    $region23: #{tpu_custom_call.1} parent=1 // pred_check_branch
      %77 = sbr.rel (%p75) target = $region25
    $region24: #{tpu_custom_call.1} parent=1 // pred_region
      %v78 = vmul.f32 %v31, 30.0
      %vm79 = vcmask 1045504
      %v80 = vsel %vm79, %v73, 0.0
      %81 = vadd.xlane.f32.xlu0 %v80
      %v82 = vpop.xlane.xlu0 %81
      %v83 = vsub.f32 %v78, 30.0
      %v84 = vmul.f32 %v83, 1.442695
      %v85 = vpow.pop %v84
      %v86 = vld [vmem:[%s2] sm:$0x3f]
      %v87 = vsub.f32 %v86, 30.0
      %v88 = vmul.f32 %v87, 1.442695
      %v89 = vpow.pop %v88
      %v90 = vsub.f32 %v82, %v89
      %v91 = vadd.f32 %v90, %v85
      %v92 = vmax.f32 %v91, %v85
      %v93 = vlog2.pop %v92
      %v94 = vmul.f32 %v93, 0.6931472
      %v95 = vadd.f32 %v94, 30.0
      %v96 = vsub.f32 %v95, %v78
      %vm97 = vcmask 5120
      %98 = vst.msk [vmem:[%s3] sm:$0x3f] %vm97, %v96
    $region25: #{tpu_custom_call.1} parent=1 // pred_fallthru
      _
    // Predicated region
    $region26: #{tpu_custom_call.1} parent=1 // pred_check
      _
    $region27: #{tpu_custom_call.1} parent=1 // pred_check_branch
      %100 = sbr.rel (0) target = $region29
    $region28: #{tpu_custom_call.1} parent=1 // pred_region
      _
    $region29: #{tpu_custom_call.1} parent=1 // pred_fallthru
      _
    // Predicated region
    $region30: #{tpu_custom_call.1} parent=1 // pred_check
      _
    $region31: #{tpu_custom_call.1} parent=1 // pred_check_branch
      %102 = sbr.rel (0) target = $region33
    $region32: #{tpu_custom_call.1} parent=1 // pred_region
      _
    $region33: #{tpu_custom_call.1} parent=1 // pred_fallthru
      _
    %103 = vsyncpa [#allocation4], 1

</llo_original>
